<compile_context>
chip_gen: v7x
topology: tpu7x:2x2x1
jax: 0.10.0
libtpu: 0.0.40
codegen_flags: <defaults>
</compile_context>

<pallas_src>
import numpy as np
import jax
import jax.numpy as jnp
from jax.experimental import pallas as pl
from jax.experimental.pallas import tpu as pltpu

IN_CHANNEL = 32        # adaptor_in_channel  (visual feature dim)
OUT_CHANNEL = 64       # adaptor_out_channel (LLM hidden dim)
VOCAB = 128
IMG_MARKER = 99999
TOKENS_PER_IMG = 32    # image tokens per image

LANE = 128             # lane width: the hidden activation dim is padded to this
ROW_QUANTUM = 16       # bf16 sublane packing -> token-row tiles are multiples of 16
MAX_TOKEN_TILE = 1024  # rows per grid step (tile sweep: 512-1024 ~ 85% of HBM roofline)


def _round_up(x, m):
    return (x + m - 1) // m * m


def _cdiv(a, b):
    return -(-a // b)


def _gelu_tanh(x):
    # tanh-approx GELU in f32: 0.5*x*(1 + tanh(sqrt(2/pi)*(x + 0.044715*x^3))).
    # tanh lowers to the EUP slot; torch's default nn.GELU is erf-exact, the ~5e-4
    # delta is inside the test tolerance (flagged in case parity requirements tighten).
    c = 0.7978845608028654
    return 0.5 * x * (1.0 + jnp.tanh(c * (x + 0.044715 * x * x * x)))


# ---------------------------------------------------------------------------
# Pallas kernel: fused Linear -> GELU -> Linear over one token tile.
#   x     : (tile, 32)   bf16   (native 32 lanes, no pad)
#   W1    : (32, 128)    bf16   (hidden 64 zero-padded to 128 lanes)
#   b1    : (1, 128)     f32
#   W2    : (128, 64)    bf16   (padded hidden rows are zero)
#   b2    : (1, 64)      f32
#   out   : (tile, 64)   f32    (cout emitted directly; no column slice needed)
# Both dots accumulate in f32 on the MXU; GELU/bias math stays in f32 (v5e-safe).
# ---------------------------------------------------------------------------
def projector_kernel(x_ref, w1_ref, b1_ref, w2_ref, b2_ref, o_ref):
    x = x_ref[...]                                                       # (tile, 32) bf16
    h = jnp.dot(x, w1_ref[...], preferred_element_type=jnp.float32)      # (tile, 128) f32
    h = _gelu_tanh(h + b1_ref[...])                                      # f32 math
    o = jnp.dot(h.astype(jnp.bfloat16), w2_ref[...],
                preferred_element_type=jnp.float32) + b2_ref[...]        # (tile, 64) f32
    o_ref[...] = o.astype(o_ref.dtype)


def prepare_projector_params(w1, b1, w2, b2):
    """One-time weight prep: bf16 weights, hidden dim zero-padded to 128 lanes.

    Cin (32) and Cout (64) are NOT padded (full-array dims in the BlockSpecs);
    hid/cout are NOT padded beyond 128/64 (kernel is HBM-bound, not MXU-bound).
    """
    cin, hid = w1.shape
    hid2, cout = w2.shape
    assert hid == hid2
    hid_p = _round_up(hid, LANE)
    w1p = jnp.zeros((cin, hid_p), jnp.bfloat16).at[:, :hid].set(w1.astype(jnp.bfloat16))
    b1p = jnp.zeros((1, hid_p), jnp.float32).at[:, :hid].set(
        jnp.reshape(b1, (1, hid)).astype(jnp.float32))
    w2p = jnp.zeros((hid_p, cout), jnp.bfloat16).at[:hid, :].set(w2.astype(jnp.bfloat16))
    b2p = jnp.reshape(b2, (1, cout)).astype(jnp.float32)
    return dict(w1=w1p, b1=b1p, w2=w2p, b2=b2p, cin=cin, cout=cout)


def _choose_tile(n, max_tile=MAX_TOKEN_TILE, row_q=ROW_QUANTUM):
    """Pick (tile, n_pad): minimal row padding, tile % 16 == 0, >=2 (even) blocks
    whenever possible so v7x's two TensorCores both get work."""
    n_q = _round_up(max(n, row_q), row_q)
    if n_q <= max_tile:
        n_blocks = 2 if n_q >= 2 * row_q else 1
    else:
        n_blocks = _cdiv(n_q, max_tile)
        if n_blocks % 2:
            n_blocks += 1
    tile = _round_up(_cdiv(n_q, n_blocks), row_q)
    return tile, tile * n_blocks


def _projector_impl(x, w1p, b1p, w2p, b2p):
    """(n, 32) -> (n, 64). Cast to bf16, row-pad, one pallas_call, row-slice.
    Meant to be called inside jit so the pad/slice fuse around the custom call."""
    n, cin = x.shape
    cout = w2p.shape[1]
    tile, n_pad = _choose_tile(n)
    xp = jnp.pad(x.astype(jnp.bfloat16), ((0, n_pad - n), (0, 0)))

    out = pl.pallas_call(
        projector_kernel,
        out_shape=jax.ShapeDtypeStruct((n_pad, cout), jnp.float32),
        grid_spec=pl.GridSpec(
            grid=(n_pad // tile,),
            in_specs=[
                pl.BlockSpec((tile, cin), lambda i: (i, 0)),    # x: native 32 lanes
                pl.BlockSpec(w1p.shape, lambda i: (0, 0)),      # W1 (resident)
                pl.BlockSpec(b1p.shape, lambda i: (0, 0)),      # b1
                pl.BlockSpec(w2p.shape, lambda i: (0, 0)),      # W2 (resident)
                pl.BlockSpec(b2p.shape, lambda i: (0, 0)),      # b2
            ],
            out_specs=pl.BlockSpec((tile, cout), lambda i: (i, 0)),
        ),
        compiler_params=pltpu.CompilerParams(
            dimension_semantics=("parallel",)),   # >=2 blocks shard across v7x's 2 TCs
    )(xp, w1p, b1p, w2p, b2p)
    # Padded rows [n:] are garbage (bias+GELU of zeros) and are never read past here.
    return out[:n]


_projector_jit = jax.jit(_projector_impl)


def projector_pallas(x, pp):
    return _projector_jit(x, pp["w1"], pp["b1"], pp["w2"], pp["b2"])


@jax.jit
def _project_images_jit(img_token_tuple, w1p, b1p, w2p, b2p):
    """Project every image's tokens in ONE fused trace: concat rows -> pad ->
    pallas_call -> slice -> split/reshape back per image."""
    shapes = [(t.shape[0], t.shape[1]) for t in img_token_tuple]
    rows = jnp.concatenate([t.reshape(-1, t.shape[-1]) for t in img_token_tuple], axis=0)
    proj = _projector_impl(rows, w1p, b1p, w2p, b2p)
    outs, off = [], 0
    for (b, t) in shapes:
        outs.append(proj[off:off + b * t].reshape(b, t, proj.shape[-1]))
        off += b * t
    return tuple(outs)


# -------------------- pure-JAX references (for checking) --------------------
def projector_reference_bf16(x, w1, b1, w2, b2):
    """Same precision recipe as the kernel (bf16 inputs, f32 accum, f32 GELU)."""
    h = jnp.dot(x.astype(jnp.bfloat16), w1.astype(jnp.bfloat16),
                preferred_element_type=jnp.float32) + jnp.reshape(b1, (1, -1))
    h = _gelu_tanh(h)
    return jnp.dot(h.astype(jnp.bfloat16), w2.astype(jnp.bfloat16),
                   preferred_element_type=jnp.float32) + jnp.reshape(b2, (1, -1))


def projector_reference_f32(x, w1, b1, w2, b2):
    h = _gelu_tanh(x @ w1 + jnp.reshape(b1, (1, -1)))
    return h @ w2 + jnp.reshape(b2, (1, -1))


# ---------------------------------------------------------------------------
# Host-side glue reproducing MLLM_InputAdaptor_Vicuna.forward (answers=None).
# ---------------------------------------------------------------------------
def split_instruction(text_ids):
    """torch.split at the 99999 image markers; drop the marker from later chunks."""
    img_idx = np.where(text_ids == IMG_MARKER)[0].tolist()
    chunks = np.split(text_ids, img_idx) if img_idx else [text_ids]
    return [chunks[0]] + [c[1:] for c in chunks[1:]]


def adaptor_forward(params, img_tokens, local_tokens, instructions, answers=None,
                    project=None):
    if answers is not None:
        # TODO(synk): training-path packing (input_targets / attention / loss masks via
        # tokenizer find_id_starts) is variable-length host-side python over token ids;
        # no clean Pallas equivalent — only the inference path is implemented.
        raise NotImplementedError
    pp = params["proj_padded"]

    # instruction embeds: split at image markers, embedding-table gather (glue).
    instruction_embeds = []
    for text in instructions:
        chunks = split_instruction(np.asarray(text))
        instruction_embeds.append(
            [params["embed"][jnp.asarray(c, jnp.int32)] for c in chunks])

    # projector: batch EVERY image's tokens through one fused jitted call.
    # (The original module projects all images even though the answers=None path only
    #  consumes index 0; batching makes the extra projections essentially free.)
    tok_list = tuple(tok for _, tok in img_tokens)
    if project is None:
        proj_list = _project_images_jit(tok_list, pp["w1"], pp["b1"], pp["w2"], pp["b2"])
    else:  # reference/injection path
        shapes = [(t.shape[0], t.shape[1]) for t in tok_list]
        rows = jnp.concatenate([t.reshape(-1, t.shape[-1]) for t in tok_list], axis=0)
        proj_all = project(rows)
        offs = np.cumsum([0] + [b * t for b, t in shapes])
        proj_list = [proj_all[offs[i]:offs[i + 1]].reshape(b, t, -1)
                     for i, (b, t) in enumerate(shapes)]

    proj_img_tokens = []
    for i, proj in enumerate(proj_list):
        b = proj.shape[0]
        start = jnp.broadcast_to(params["visual_start"], (b, 1, OUT_CHANNEL))
        end = jnp.broadcast_to(params["visual_end"], (b, 1, OUT_CHANNEL))
        if len(local_tokens) > 0:
            loc = local_tokens[i].reshape(1, -1, OUT_CHANNEL)
            loc = jnp.broadcast_to(loc, (b,) + loc.shape[1:])
            proj = jnp.concatenate([start, proj, loc, end], axis=1)
        else:
            proj = jnp.concatenate([start, proj, end], axis=1)
        proj_img_tokens.append(proj)

    # answers is None  ->  interleave instruction chunks with image token blocks
    # (mirrors the original: only sample 0 is consumed in this path).
    parts = []
    for j in range(proj_img_tokens[0].shape[0]):
        parts.append(instruction_embeds[0][j])
        parts.append(proj_img_tokens[0][j])
    parts.append(instruction_embeds[0][-1])
    return jnp.concatenate(parts, axis=0)[None]              # (1, total_len, OUT_CHANNEL)


if __name__ == "__main__":
    key = jax.random.PRNGKey(0)
    ks = iter(jax.random.split(key, 20))
    token_std = OUT_CHANNEL ** (-0.5)

    w1 = jax.random.normal(next(ks), (IN_CHANNEL, OUT_CHANNEL), jnp.float32) * (IN_CHANNEL ** -0.5)
    b1 = jax.random.normal(next(ks), (1, OUT_CHANNEL), jnp.float32) * 0.01
    w2 = jax.random.normal(next(ks), (OUT_CHANNEL, OUT_CHANNEL), jnp.float32) * (OUT_CHANNEL ** -0.5)
    b2 = jax.random.normal(next(ks), (1, OUT_CHANNEL), jnp.float32) * 0.01

    params = dict(
        w1=w1, b1=b1, w2=w2, b2=b2,
        proj_padded=prepare_projector_params(w1, b1, w2, b2),
        visual_start=jax.random.normal(next(ks), (1, 1, OUT_CHANNEL), jnp.float32) * token_std,
        visual_end=jax.random.normal(next(ks), (1, 1, OUT_CHANNEL), jnp.float32) * token_std,
        embed=jax.random.normal(next(ks), (VOCAB, OUT_CHANNEL), jnp.float32) * 0.02,
    )

    # batch of 2 samples, one image each (flag, img_token) with img_token (1, T, Cin)
    img_tokens = [
        (True, jax.random.normal(next(ks), (1, TOKENS_PER_IMG, IN_CHANNEL), jnp.float32)),
        (True, jax.random.normal(next(ks), (1, TOKENS_PER_IMG, IN_CHANNEL), jnp.float32)),
    ]
    local_tokens = [
        jax.random.normal(next(ks), (4, OUT_CHANNEL), jnp.float32),
        jax.random.normal(next(ks), (4, OUT_CHANNEL), jnp.float32),
    ]
    instructions = [
        np.array([3, 5, 7, 9, IMG_MARKER, 11, 13, 17], dtype=np.int64),
        np.array([2, 4, 6, IMG_MARKER, 8, 10], dtype=np.int64),
    ]

    out = adaptor_forward(params, img_tokens, local_tokens, instructions, answers=None)
    out = jax.block_until_ready(out)

    # Reference with the same bf16/f32-accum precision recipe (tight tolerance).
    ref = adaptor_forward(
        params, img_tokens, local_tokens, instructions, answers=None,
        project=lambda x: projector_reference_bf16(x, w1, b1, w2, b2))
    np.testing.assert_allclose(np.asarray(out), np.asarray(ref), rtol=2e-3, atol=2e-3)
    assert out.shape == (1, 4 + (1 + TOKENS_PER_IMG + 4 + 1) + 3, OUT_CHANNEL)

    # projector-only checks:
    #   n=5    -> single 16-row tile (row padding path)
    #   n=64   -> the hot case, grid=(2,) so both v7x TCs get a block
    #   n=600  -> two 304-row tiles (minimal padding, even grid)
    #   n=1500 -> exercises the > MAX_TOKEN_TILE block-count path
    for n in (5, 64, 600, 1500):
        xt = jax.random.normal(next(ks), (n, IN_CHANNEL), jnp.float32)
        yk = jax.block_until_ready(projector_pallas(xt, params["proj_padded"]))
        yb = projector_reference_bf16(xt, w1, b1, w2, b2)   # same precision recipe
        yf = projector_reference_f32(xt, w1, b1, w2, b2)    # full f32 sanity check
        np.testing.assert_allclose(np.asarray(yk), np.asarray(yb), rtol=2e-3, atol=2e-3)
        np.testing.assert_allclose(np.asarray(yk), np.asarray(yf), rtol=5e-2, atol=5e-2)

    print("KERNEL_OK")
</pallas_src>

<mosaic_0001>
module attributes {stable_mosaic.version = 11 : i64} {
  func.func @projector_kernel(%arg0: i32, %arg1: memref<32x32xbf16, #tpu.memory_space<vmem>>, %arg2: memref<32x128xbf16, #tpu.memory_space<vmem>>, %arg3: memref<1x128xf32, #tpu.memory_space<vmem>>, %arg4: memref<128x64xbf16, #tpu.memory_space<vmem>>, %arg5: memref<1x64xf32, #tpu.memory_space<vmem>>, %arg6: memref<32x64xf32, #tpu.memory_space<vmem>>) attributes {dimension_semantics = [#tpu.dimension_semantics<parallel>], iteration_bounds = array<i64: 2>, scalar_prefetch = 0 : i64, scratch_operands = 0 : i64, tpu.core_type = #tpu.core_type<tc>, window_params = [{transform_indices = @transform_0, window_bounds = array<i64: 32, 32>}, {pipeline_mode = #tpu.pipeline_mode<synchronous>, transform_indices = @transform_1, window_bounds = array<i64: 32, 128>}, {pipeline_mode = #tpu.pipeline_mode<synchronous>, transform_indices = @transform_2, window_bounds = array<i64: 1, 128>}, {pipeline_mode = #tpu.pipeline_mode<synchronous>, transform_indices = @transform_3, window_bounds = array<i64: 128, 64>}, {pipeline_mode = #tpu.pipeline_mode<synchronous>, transform_indices = @transform_4, window_bounds = array<i64: 1, 64>}, {transform_indices = @transform_5, window_bounds = array<i64: 32, 64>}]} {
    %c0 = arith.constant 0 : index
    %c0_0 = arith.constant 0 : index
    %0 = vector.load %arg1[%c0, %c0_0] : memref<32x32xbf16, #tpu.memory_space<vmem>>, vector<32x32xbf16>
    %c0_1 = arith.constant 0 : index
    %c0_2 = arith.constant 0 : index
    %1 = vector.load %arg2[%c0_1, %c0_2] : memref<32x128xbf16, #tpu.memory_space<vmem>>, vector<32x128xbf16>
    %cst = arith.constant dense<0.000000e+00> : vector<32x128xf32>
    %2 = tpu.matmul %0, %1, %cst {dimension_numbers = #tpu.dot_dimension_numbers<[1], [0], [0], [1], [0, 0, 1, 1], [], []>} : vector<32x32xbf16>, vector<32x128xbf16>, vector<32x128xf32> -> vector<32x128xf32>
    %c0_3 = arith.constant 0 : index
    %c0_4 = arith.constant 0 : index
    %3 = vector.load %arg3[%c0_3, %c0_4] : memref<1x128xf32, #tpu.memory_space<vmem>>, vector<1x128xf32>
    %4 = vector.broadcast %3 : vector<1x128xf32> to vector<32x128xf32>
    %5 = arith.addf %2, %4 : vector<32x128xf32>
    %cst_5 = arith.constant 5.000000e-01 : f32
    %6 = vector.broadcast %cst_5 : f32 to vector<32x128xf32>
    %7 = arith.mulf %6, %5 : vector<32x128xf32>
    %cst_6 = arith.constant 4.471500e-02 : f32
    %8 = vector.broadcast %cst_6 : f32 to vector<32x128xf32>
    %9 = arith.mulf %8, %5 : vector<32x128xf32>
    %10 = arith.mulf %9, %5 : vector<32x128xf32>
    %11 = arith.mulf %10, %5 : vector<32x128xf32>
    %12 = arith.addf %5, %11 : vector<32x128xf32>
    %cst_7 = arith.constant 0.797884583 : f32
    %13 = vector.broadcast %cst_7 : f32 to vector<32x128xf32>
    %14 = arith.mulf %13, %12 : vector<32x128xf32>
    %15 = math.tanh %14 : vector<32x128xf32>
    %cst_8 = arith.constant 1.000000e+00 : f32
    %16 = vector.broadcast %cst_8 : f32 to vector<32x128xf32>
    %17 = arith.addf %16, %15 : vector<32x128xf32>
    %18 = arith.mulf %7, %17 : vector<32x128xf32>
    %19 = arith.truncf %18 : vector<32x128xf32> to vector<32x128xbf16>
    %c0_9 = arith.constant 0 : index
    %c0_10 = arith.constant 0 : index
    %20 = vector.load %arg4[%c0_9, %c0_10] : memref<128x64xbf16, #tpu.memory_space<vmem>>, vector<128x64xbf16>
    %cst_11 = arith.constant dense<0.000000e+00> : vector<32x64xf32>
    %21 = tpu.matmul %19, %20, %cst_11 {dimension_numbers = #tpu.dot_dimension_numbers<[1], [0], [0], [1], [0, 0, 1, 1], [], []>} : vector<32x128xbf16>, vector<128x64xbf16>, vector<32x64xf32> -> vector<32x64xf32>
    %c0_12 = arith.constant 0 : index
    %c0_13 = arith.constant 0 : index
    %22 = vector.load %arg5[%c0_12, %c0_13] : memref<1x64xf32, #tpu.memory_space<vmem>>, vector<1x64xf32>
    %23 = vector.broadcast %22 : vector<1x64xf32> to vector<32x64xf32>
    %24 = arith.addf %21, %23 : vector<32x64xf32>
    %c0_14 = arith.constant 0 : index
    %c0_15 = arith.constant 0 : index
    %25 = vector.load %arg6[%c0_14, %c0_15] : memref<32x64xf32, #tpu.memory_space<vmem>>, vector<32x64xf32>
    tpu.vector_store %arg6[%c0_14, %c0_15], %24 {strides = array<i32>} : memref<32x64xf32, #tpu.memory_space<vmem>>, vector<32x64xf32>,
    return
  }
  func.func @transform_0(%arg0: i32) -> (i32, i32) {
    %c0_i32 = arith.constant 0 : i32
    %c0_i32_0 = arith.constant 0 : i32
    return %arg0, %c0_i32 : i32, i32
  }
  func.func @transform_1(%arg0: i32) -> (i32, i32) {
    %c0_i32 = arith.constant 0 : i32
    %c0_i32_0 = arith.constant 0 : i32
    %c0_i32_1 = arith.constant 0 : i32
    return %c0_i32, %c0_i32_0 : i32, i32
  }
  func.func @transform_2(%arg0: i32) -> (i32, i32) {
    %c0_i32 = arith.constant 0 : i32
    %c0_i32_0 = arith.constant 0 : i32
    %c0_i32_1 = arith.constant 0 : i32
    return %c0_i32, %c0_i32_0 : i32, i32
  }
  func.func @transform_3(%arg0: i32) -> (i32, i32) {
    %c0_i32 = arith.constant 0 : i32
    %c0_i32_0 = arith.constant 0 : i32
    %c0_i32_1 = arith.constant 0 : i32
    return %c0_i32, %c0_i32_0 : i32, i32
  }
  func.func @transform_4(%arg0: i32) -> (i32, i32) {
    %c0_i32 = arith.constant 0 : i32
    %c0_i32_0 = arith.constant 0 : i32
    %c0_i32_1 = arith.constant 0 : i32
    return %c0_i32, %c0_i32_0 : i32, i32
  }
  func.func @transform_5(%arg0: i32) -> (i32, i32) {
    %c0_i32 = arith.constant 0 : i32
    %c0_i32_0 = arith.constant 0 : i32
    return %arg0, %c0_i32 : i32, i32
  }
}

</mosaic_0001>

<llo_original>
// kernel: _project_images_jit.1
$region0: #{_project_images_jit.1}
  #allocation0 [shape = 'u32[]', space=smem, size = 0x4, offset = 0x4, fixed_abs, tag = 'smem constant byte address 0x4 - core index']
  #allocation1 [shape = 'u32[144,128]{1,0:T(1,128)}', space=vmem, size = 0x12000, scoped, tag = 'internal scratch']
  %s0 = inlined_call_operand.vmem [shape: bf16[64,32], index: 0, kind: input, shape index: {}]
  %s1 = inlined_call_operand.vmem [shape: bf16[32,128], index: 1, kind: input, shape index: {}]
  %s2 = inlined_call_operand.vmem [shape: f32[1,128], index: 2, kind: input, shape index: {}]
  %s3 = inlined_call_operand.vmem [shape: bf16[128,64], index: 3, kind: input, shape index: {}]
  %s4 = inlined_call_operand.vmem [shape: f32[1,64], index: 4, kind: input, shape index: {}]
  %s5 = inlined_call_operand.vmem [shape: f32[64,64], index: 5, kind: output, shape index: {}]
  %s6 = sld [smem:[#allocation0]]
  $region53: #{_project_images_jit.1} parent=0
    _
  %s8 = ssub.s32 1, %s6
  %s9 = scalar_select 0, %s8, %s6
  loop: start=0, step=1, limit=4
  $region2: #{_project_images_jit.1} parent=0 // loop_pre_header
    _
  $region3: #{_project_images_jit.1} parent=0 // loop_header
    %s11 = sphi 0, %s15
    %p12 = scmp.ge.s32.totalorder %s11, 4
    %s21 = sphi 0, %s23
    %s24 = sphi 0, %s21
    %s25 = sphi 0, %s24
    %s41 = sphi 0, %s25
    %s45 = sphi 0, %s45
    %s47 = sphi 0, %s45
    %s48 = sphi 0, %s47
    %s62 = sphi 0, %s48
    %s66 = sphi 0, %s66
    %s68 = sphi 0, %s66
    %s69 = sphi 0, %s68
    %s83 = sphi 0, %s69
    %s87 = sphi 0, %s87
    %s89 = sphi 0, %s87
    %s90 = sphi 0, %s89
    %s104 = sphi 0, %s90
    %s108 = sphi 0, %s108
    %s110 = sphi 0, %s108
    %s111 = sphi 0, %s110
    %s125 = sphi 0, %s111
    %s131 = sphi 0, %s133
    %s134 = sphi 0, %s131
    %s135 = sphi 0, %s134
    %s151 = sphi 0, %s135
  $region4: #{_project_images_jit.1} parent=0 // loop_header_branch
    %14 = sbr.rel (%p12) target = $region8
  $region5: #{_project_images_jit.1} parent=0 // loop_body
    %s16 = ssub.s32 %s11, 1
    %s17 = ssub.s32 %s11, 2
    %s18 = sadd.s32 %s11, 1
    %s19 = ssub.s32 %s11, %s18
    %p20 = scmp.eq.s32.totalorder %s19, 0
    %s22 = sadd.s32 %s21, 1
    %s23 = scalar_select %p20, %s21, %s22
    %p26 = pneg %p20
    %p27 = scmp.eq.s32.totalorder %s11, 1
    %p28 = por %p26, %p27
    %p29 = scmp.ne.s32.totalorder %s21, %s24
    %p30 = scmp.eq.s32.totalorder %s11, 0
    %p31 = por %p29, %p30
    %p32 = scmp.ne.s32.totalorder %s21, %s24
    %p33 = scmp.eq.s32.totalorder %s16, 1
    %p34 = por %p32, %p33
    %p35 = scmp.ne.s32.totalorder %s24, %s25
    %p36 = scmp.eq.s32.totalorder %s16, 0
    %p37 = por %p35, %p36
    %p38 = scmp.ne.s32.totalorder %s24, %s25
    %p39 = scmp.eq.s32.totalorder %s17, 1
    %p40 = por %p38, %p39
    %p42 = scmp.ne.s32.totalorder %s25, %s41
    %p43 = scmp.eq.s32.totalorder %s17, 0
    %p44 = por %p42, %p43
    %s46 = sadd.s32 %s45, 1
    %p49 = scmp.eq.s32.totalorder %s11, 1
    %p50 = scmp.ne.s32.totalorder %s45, %s47
    %p51 = scmp.eq.s32.totalorder %s11, 0
    %p52 = por %p50, %p51
    %p53 = scmp.ne.s32.totalorder %s45, %s47
    %p54 = scmp.eq.s32.totalorder %s16, 1
    %p55 = por %p53, %p54
    %p56 = scmp.ne.s32.totalorder %s47, %s48
    %p57 = scmp.eq.s32.totalorder %s16, 0
    %p58 = por %p56, %p57
    %p59 = scmp.ne.s32.totalorder %s47, %s48
    %p60 = scmp.eq.s32.totalorder %s17, 1
    %p61 = por %p59, %p60
    %p63 = scmp.ne.s32.totalorder %s48, %s62
    %p64 = scmp.eq.s32.totalorder %s17, 0
    %p65 = por %p63, %p64
    %s67 = sadd.s32 %s66, 1
    %p70 = scmp.eq.s32.totalorder %s11, 1
    %p71 = scmp.ne.s32.totalorder %s66, %s68
    %p72 = scmp.eq.s32.totalorder %s11, 0
    %p73 = por %p71, %p72
    %p74 = scmp.ne.s32.totalorder %s66, %s68
    %p75 = scmp.eq.s32.totalorder %s16, 1
    %p76 = por %p74, %p75
    %p77 = scmp.ne.s32.totalorder %s68, %s69
    %p78 = scmp.eq.s32.totalorder %s16, 0
    %p79 = por %p77, %p78
    %p80 = scmp.ne.s32.totalorder %s68, %s69
    %p81 = scmp.eq.s32.totalorder %s17, 1
    %p82 = por %p80, %p81
    %p84 = scmp.ne.s32.totalorder %s69, %s83
    %p85 = scmp.eq.s32.totalorder %s17, 0
    %p86 = por %p84, %p85
    %s88 = sadd.s32 %s87, 1
    %p91 = scmp.eq.s32.totalorder %s11, 1
    %p92 = scmp.ne.s32.totalorder %s87, %s89
    %p93 = scmp.eq.s32.totalorder %s11, 0
    %p94 = por %p92, %p93
    %p95 = scmp.ne.s32.totalorder %s87, %s89
    %p96 = scmp.eq.s32.totalorder %s16, 1
    %p97 = por %p95, %p96
    %p98 = scmp.ne.s32.totalorder %s89, %s90
    %p99 = scmp.eq.s32.totalorder %s16, 0
    %p100 = por %p98, %p99
    %p101 = scmp.ne.s32.totalorder %s89, %s90
    %p102 = scmp.eq.s32.totalorder %s17, 1
    %p103 = por %p101, %p102
    %p105 = scmp.ne.s32.totalorder %s90, %s104
    %p106 = scmp.eq.s32.totalorder %s17, 0
    %p107 = por %p105, %p106
    %s109 = sadd.s32 %s108, 1
    %p112 = scmp.eq.s32.totalorder %s11, 1
    %p113 = scmp.ne.s32.totalorder %s108, %s110
    %p114 = scmp.eq.s32.totalorder %s11, 0
    %p115 = por %p113, %p114
    %p116 = scmp.ne.s32.totalorder %s108, %s110
    %p117 = scmp.eq.s32.totalorder %s16, 1
    %p118 = por %p116, %p117
    %p119 = scmp.ne.s32.totalorder %s110, %s111
    %p120 = scmp.eq.s32.totalorder %s16, 0
    %p121 = por %p119, %p120
    %p122 = scmp.ne.s32.totalorder %s110, %s111
    %p123 = scmp.eq.s32.totalorder %s17, 1
    %p124 = por %p122, %p123
    %p126 = scmp.ne.s32.totalorder %s111, %s125
    %p127 = scmp.eq.s32.totalorder %s17, 0
    %p128 = por %p126, %p127
    %s129 = ssub.s32 %s11, %s18
    %p130 = scmp.eq.s32.totalorder %s129, 0
    %s132 = sadd.s32 %s131, 1
    %s133 = scalar_select %p130, %s131, %s132
    %p136 = pneg %p130
    %p137 = scmp.eq.s32.totalorder %s11, 1
    %p138 = por %p136, %p137
    %p139 = scmp.ne.s32.totalorder %s131, %s134
    %p140 = scmp.eq.s32.totalorder %s11, 0
    %p141 = por %p139, %p140
    %p142 = scmp.ne.s32.totalorder %s131, %s134
    %p143 = scmp.eq.s32.totalorder %s16, 1
    %p144 = por %p142, %p143
    %p145 = scmp.ne.s32.totalorder %s134, %s135
    %p146 = scmp.eq.s32.totalorder %s16, 0
    %p147 = por %p145, %p146
    %p148 = scmp.ne.s32.totalorder %s134, %s135
    %p149 = scmp.eq.s32.totalorder %s17, 1
    %p150 = por %p148, %p149
    %p152 = scmp.ne.s32.totalorder %s135, %s151
    %p153 = scmp.eq.s32.totalorder %s17, 0
    %p154 = por %p152, %p153
    %p155 = scmp.le.s32.totalorder 1, %s11
    %p156 = scmp.lt.s32.totalorder %s11, 3
    %p157 = pnand %p155, %p156
    %p158 = pneg %p157
    // Predicated region
    $region9: #{_project_images_jit.1} parent=5 // pred_check
      _
    $region10: #{_project_images_jit.1} parent=5 // pred_check_branch
      %160 = sbr.rel (%p157) target = $region12
    $region11: #{_project_images_jit.1} parent=5 // pred_region
      %s161 = ssub.s32 %s11, 1
      // Predicated region
      $region13: #{_project_images_jit.1} parent=11 // pred_check
        %p162 = pneg %p58
      $region14: #{_project_images_jit.1} parent=11 // pred_check_branch
        %164 = sbr.rel (%p162) target = $region16
      $region15: #{_project_images_jit.1} parent=11 // pred_region
        _
      $region16: #{_project_images_jit.1} parent=11 // pred_fallthru
        _
      // Predicated region
      $region17: #{_project_images_jit.1} parent=11 // pred_check
        %p165 = pneg %p79
      $region18: #{_project_images_jit.1} parent=11 // pred_check_branch
        %167 = sbr.rel (%p165) target = $region20
      $region19: #{_project_images_jit.1} parent=11 // pred_region
        _
      $region20: #{_project_images_jit.1} parent=11 // pred_fallthru
        _
      // Predicated region
      $region21: #{_project_images_jit.1} parent=11 // pred_check
        %p168 = pneg %p100
      $region22: #{_project_images_jit.1} parent=11 // pred_check_branch
        %170 = sbr.rel (%p168) target = $region24
      $region23: #{_project_images_jit.1} parent=11 // pred_region
        _
      $region24: #{_project_images_jit.1} parent=11 // pred_fallthru
        _
      // Predicated region
      $region25: #{_project_images_jit.1} parent=11 // pred_check
        %p171 = pneg %p121
      $region26: #{_project_images_jit.1} parent=11 // pred_check_branch
        %173 = sbr.rel (%p171) target = $region28
      $region27: #{_project_images_jit.1} parent=11 // pred_region
        _
      $region28: #{_project_images_jit.1} parent=11 // pred_fallthru
        _
    $region12: #{_project_images_jit.1} parent=5 // pred_fallthru
      _
    %p174 = scmp.lt.s32.totalorder %s11, 2
    // Predicated region
    $region29: #{_project_images_jit.1} parent=5 // pred_check
      %p175 = pneg %p174
    $region30: #{_project_images_jit.1} parent=5 // pred_check_branch
      %177 = sbr.rel (%p175) target = $region32
    $region31: #{_project_images_jit.1} parent=5 // pred_region
      // Predicated region
      $region33: #{_project_images_jit.1} parent=31 // pred_check
        %p178 = pneg %p31
      $region34: #{_project_images_jit.1} parent=31 // pred_check_branch
        %180 = sbr.rel (%p178) target = $region36
      $region35: #{_project_images_jit.1} parent=31 // pred_region
        %s181 = smul.u32 4, %s11
        %p182 = scmp.lt.s32.totalorder %s181, 7
        %s183 = scalar_select %p182, %s181, 7
        %s184 = smul.addr %s183, 4
        %s185 = scalar_lea.vmem %s0, %s184
        %s186 = smul.u32 4, %s11
      $region36: #{_project_images_jit.1} parent=31 // pred_fallthru
        _
    $region32: #{_project_images_jit.1} parent=5 // pred_fallthru
      _
    %p187 = scmp.le.s32.totalorder 1, %s11
    %p188 = scmp.lt.s32.totalorder %s11, 3
    %p189 = pnand %p187, %p188
    %p190 = pneg %p189
    // Predicated region
    $region37: #{_project_images_jit.1} parent=5 // pred_check
      _
    $region38: #{_project_images_jit.1} parent=5 // pred_check_branch
      %192 = sbr.rel (%p189) target = $region40
    $region39: #{_project_images_jit.1} parent=5 // pred_region
      %s193 = ssub.s32 %s11, 1
      %s194 = smul.u32 4, %s16
      %p195 = scmp.lt.s32.totalorder %s194, 7
      %s196 = scalar_select %p195, %s194, 7
      %s197 = smul.addr %s196, 4
      %s198 = scalar_lea.vmem %s0, %s197
      %p199 = pneg %p37
      %p200 = pneg %p34
      %p201 = pneg %p58
      %p202 = pneg %p55
      %p203 = pneg %p79
      %p204 = pneg %p76
      %p205 = pneg %p100
      %p206 = pneg %p97
      %p207 = pneg %p121
      %p208 = pneg %p118
      %p209 = pneg %p147
      %p210 = pneg %p144
      %s211 = smul.u32 4, %s16
      %p212 = scmp.lt.s32.totalorder %s211, 7
      %s213 = scalar_select %p212, %s211, 7
      %s214 = smul.addr %s213, 8
      %s215 = scalar_lea.vmem %s5, %s214
      %s216 = smul.u32 4, %s16
      %p217 = scmp.lt.s32.totalorder %s216, 7
      %s218 = scalar_select %p217, %s216, 7
      %s219 = smul.addr %s218, 4
      %s220 = scalar_lea.vmem %s0, %s219
      %s221 = smul.u32 4, %s16
      %s222 = smul.u32 4, %s16
      %p223 = scmp.lt.s32.totalorder %s222, 7
      %s224 = scalar_select %p223, %s222, 7
      %s225 = smul.addr %s224, 8
      %s226 = scalar_lea.vmem %s5, %s225
      %s227 = smul.u32 4, %s16
      %v229 = vld [vmem:[%s220] sm:$0xf]
      %v230 = vld [vmem:[%s220 + $0x4] sm:$0xf]
      %v231 = vld [vmem:[%s220 + $0x8] sm:$0xf]
      %v232 = vld [vmem:[%s220 + $0xc] sm:$0xf]
      %v233 = vld [vmem:[%s1] sm:$0xf]
      %v234 = vld [vmem:[%s1 + $0x4] sm:$0xf]
      %v235 = vld [vmem:[%s1 + $0x8] sm:$0xf]
      %v236 = vld [vmem:[%s1 + $0xc] sm:$0xf]
      %v237 = vld [vmem:[%s2] sm:$0x1]
      %v239 = vlaneseq
      %v240 = vshrl.u32 %v239, 7
      %v241 = vsub.s32 0, %v240
      %v242 = vrot.slane %v237, %v241
      %v248 = vunpack.c.l.b16 %v229
      %v249 = vunpack.c.l.b16 %v230
      %v250 = vunpack.c.l.b16 %v231
      %v251 = vunpack.c.l.b16 %v232
      %v252 = vpack.c.b16 %v249, %v248
      %v253 = vpack.c.b16 %v251, %v250
      %v258 = vunpack.c.l.b16 %v233
      %v259 = vunpack.c.l.b16 %v234
      %v260 = vunpack.c.l.b16 %v235
      %v261 = vunpack.c.l.b16 %v236
      %v262 = vpack.c.b16 %v259, %v258
      %v263 = vpack.c.b16 %v261, %v260
      %vm266 = vcmask 261120
      %v268 = vsel %vm266, %v252, 0
      %v271 = vsel %vm266, %v253, 0
      %273 = vmatprep.subr.bf16.mxu0 0
      %274 = vmatpush1.bf16.msra.mxu0 %v262
      %275 = vmatprep.subr.bf16.mxu0 0
      %276 = vmatpush1.bf16.msra.mxu0 %v263
      %277 = vmatprep.subr.bf16.mxu0 0
      %278 = vmatpush1.bf16.msra.mxu0 0
      %279 = vmatprep.subr.bf16.mxu0 0
      %280 = vmatpush1.bf16.msra.mxu0 0
      %281 = vmatprep.subr.bf16.mxu0 0
      %282 = vmatpush1.bf16.msra.mxu0 0
      %283 = vmatprep.subr.bf16.mxu0 0
      %284 = vmatpush1.bf16.msra.mxu0 0
      %285 = vmatprep.subr.bf16.mxu0 0
      %286 = vmatpush1.bf16.msra.mxu0 0
      %287 = vmatprep.subr.bf16.mxu0 0
      %288 = vmatpush1.bf16.msra.mxu0 0
      %289 = vmatprep.subr.bf16.mxu0 0
      %290 = vmatpush1.bf16.msra.mxu0 0
      %291 = vmatprep.subr.bf16.mxu0 0
      %292 = vmatpush1.bf16.msra.mxu0 0
      %293 = vmatprep.subr.bf16.mxu0 0
      %294 = vmatpush1.bf16.msra.mxu0 0
      %295 = vmatprep.subr.bf16.mxu0 0
      %296 = vmatpush1.bf16.msra.mxu0 0
      %297 = vmatprep.subr.bf16.mxu0 0
      %298 = vmatpush1.bf16.msra.mxu0 0
      %299 = vmatprep.subr.bf16.mxu0 0
      %300 = vmatpush1.bf16.msra.mxu0 0
      %301 = vmatprep.subr.bf16.mxu0 0
      %302 = vmatpush1.bf16.msra.mxu0 0
      %303 = vmatprep.subr.bf16.mxu0 0
      %304 = vmatpush1.bf16.msra.mxu0 0
      %305 = vmatprep.mubr.bf16.mxu0 0
      %306 = vmatmul.mubr.bf16.gmra.mrb[0].mxu0 %v268
      %v307 = vpop.f32.mrb[0].mxu0
      %v308 = vadd.f32 %v242, %v307
      %v309 = vpop.f32.mrb[0].mxu0
      %v310 = vpop.f32.mrb[0].mxu0
      %v311 = vadd.f32 %v242, %v310
      %v312 = vpop.f32.mrb[0].mxu0
      %313 = vmatprep.mubr.bf16.mxu0 0
      %314 = vmatmul.mubr.bf16.gmra.mrb[0].mxu0 %v271
      %v315 = vpop.f32.mrb[0].mxu0
      %v316 = vadd.f32 %v242, %v315
      %v317 = vpop.f32.mrb[0].mxu0
      %v318 = vpop.f32.mrb[0].mxu0
      %v319 = vadd.f32 %v242, %v318
      %v320 = vpop.f32.mrb[0].mxu0
      %321 = vdwg.mxu0
      %v322 = vmul.f32 %v308, 0.5
      %v323 = vmul.f32 %v311, 0.5
      %v324 = vmul.f32 %v316, 0.5
      %v325 = vmul.f32 %v319, 0.5
      %v326 = vmul.f32 %v308, 0.044715
      %v327 = vmul.f32 %v311, 0.044715
      %v328 = vmul.f32 %v316, 0.044715
      %v329 = vmul.f32 %v319, 0.044715
      %v330 = vmul.f32 %v326, %v308
      %v331 = vmul.f32 %v327, %v311
      %v332 = vmul.f32 %v328, %v316
      %v333 = vmul.f32 %v329, %v319
      %v334 = vmul.f32 %v330, %v308
      %v335 = vmul.f32 %v331, %v311
      %v336 = vmul.f32 %v332, %v316
      %v337 = vmul.f32 %v333, %v319
      %v338 = vadd.f32 %v308, %v334
      %v339 = vadd.f32 %v311, %v335
      %v340 = vadd.f32 %v316, %v336
      %v341 = vadd.f32 %v319, %v337
      %v342 = vmul.f32 %v338, 0.7978846
      %v343 = vmul.f32 %v339, 0.7978846
      %v344 = vmul.f32 %v340, 0.7978846
      %v345 = vmul.f32 %v341, 0.7978846
      %v346 = vtanh.pop %v342
      %v347 = vtanh.pop %v343
      %v348 = vtanh.pop %v344
      %v349 = vtanh.pop %v345
      %v350 = vadd.f32 %v346, 1.0
      %v351 = vadd.f32 %v347, 1.0
      %v352 = vadd.f32 %v348, 1.0
      %v353 = vadd.f32 %v349, 1.0
      %v354 = vmul.f32 %v322, %v350
      %v355 = vmul.f32 %v323, %v351
      %v356 = vmul.f32 %v324, %v352
      %v357 = vmul.f32 %v325, %v353
      %v358 = vpack.c.bf16 %v355, %v354
      %v359 = vpack.c.bf16 %v357, %v356
      %v360 = vld [vmem:[%s3] sm:$0xf]
      %v361 = vld [vmem:[%s3 + $0x4] sm:$0xf]
      %v362 = vld [vmem:[%s3 + $0x8] sm:$0xf]
      %v363 = vld [vmem:[%s3 + $0xc] sm:$0xf]
      %v364 = vld [vmem:[%s3 + $0x10] sm:$0xf]
      %v365 = vld [vmem:[%s3 + $0x14] sm:$0xf]
      %v366 = vld [vmem:[%s3 + $0x18] sm:$0xf]
      %v367 = vld [vmem:[%s3 + $0x1c] sm:$0xf]
      %v368 = vld [vmem:[%s3 + $0x20] sm:$0xf]
      %v369 = vld [vmem:[%s3 + $0x24] sm:$0xf]
      %v370 = vld [vmem:[%s3 + $0x28] sm:$0xf]
      %v371 = vld [vmem:[%s3 + $0x2c] sm:$0xf]
      %v372 = vld [vmem:[%s3 + $0x30] sm:$0xf]
      %v373 = vld [vmem:[%s3 + $0x34] sm:$0xf]
      %v374 = vld [vmem:[%s3 + $0x38] sm:$0xf]
      %v375 = vld [vmem:[%s3 + $0x3c] sm:$0xf]
      %v376 = vld [vmem:[%s4] sm:$0x1]
      %v378 = vlaneseq
      %v379 = vshrl.u32 %v378, 7
      %v380 = vsub.s32 0, %v379
      %v381 = vrot.slane %v376, %v380
      %v399 = vunpack.c.l.b16 %v360
      %v400 = vunpack.c.l.b16 %v361
      %v401 = vunpack.c.l.b16 %v362
      %v402 = vunpack.c.l.b16 %v363
      %v403 = vunpack.c.l.b16 %v364
      %v404 = vunpack.c.l.b16 %v365
      %v405 = vunpack.c.l.b16 %v366
      %v406 = vunpack.c.l.b16 %v367
      %v407 = vunpack.c.l.b16 %v368
      %v408 = vunpack.c.l.b16 %v369
      %v409 = vunpack.c.l.b16 %v370
      %v410 = vunpack.c.l.b16 %v371
      %v411 = vunpack.c.l.b16 %v372
      %v412 = vunpack.c.l.b16 %v373
      %v413 = vunpack.c.l.b16 %v374
      %v414 = vunpack.c.l.b16 %v375
      %v415 = vpack.c.b16 %v400, %v399
      %v416 = vpack.c.b16 %v402, %v401
      %v417 = vpack.c.b16 %v404, %v403
      %v418 = vpack.c.b16 %v406, %v405
      %v419 = vpack.c.b16 %v408, %v407
      %v420 = vpack.c.b16 %v410, %v409
      %v421 = vpack.c.b16 %v412, %v411
      %v422 = vpack.c.b16 %v414, %v413
      %431 = vmatprep.subr.bf16.mxu0 0
      %432 = vmatpush1.bf16.msra.mxu0 %v415
      %433 = vmatprep.subr.bf16.mxu0 0
      %434 = vmatpush1.bf16.msra.mxu0 %v416
      %435 = vmatprep.subr.bf16.mxu0 0
      %436 = vmatpush1.bf16.msra.mxu0 %v417
      %437 = vmatprep.subr.bf16.mxu0 0
      %438 = vmatpush1.bf16.msra.mxu0 %v418
      %439 = vmatprep.subr.bf16.mxu0 0
      %440 = vmatpush1.bf16.msra.mxu0 %v419
      %441 = vmatprep.subr.bf16.mxu0 0
      %442 = vmatpush1.bf16.msra.mxu0 %v420
      %443 = vmatprep.subr.bf16.mxu0 0
      %444 = vmatpush1.bf16.msra.mxu0 %v421
      %445 = vmatprep.subr.bf16.mxu0 0
      %446 = vmatpush1.bf16.msra.mxu0 %v422
      %447 = vmatprep.subr.bf16.mxu0 0
      %448 = vmatpush1.bf16.msra.mxu0 0
      %449 = vmatprep.subr.bf16.mxu0 0
      %450 = vmatpush1.bf16.msra.mxu0 0
      %451 = vmatprep.subr.bf16.mxu0 0
      %452 = vmatpush1.bf16.msra.mxu0 0
      %453 = vmatprep.subr.bf16.mxu0 0
      %454 = vmatpush1.bf16.msra.mxu0 0
      %455 = vmatprep.subr.bf16.mxu0 0
      %456 = vmatpush1.bf16.msra.mxu0 0
      %457 = vmatprep.subr.bf16.mxu0 0
      %458 = vmatpush1.bf16.msra.mxu0 0
      %459 = vmatprep.subr.bf16.mxu0 0
      %460 = vmatpush1.bf16.msra.mxu0 0
      %461 = vmatprep.subr.bf16.mxu0 0
      %462 = vmatpush1.bf16.msra.mxu0 0
      %463 = vmatprep.mubr.bf16.mxu0 0
      %464 = vmatmul.mubr.bf16.gmra.mrb[0].mxu0 %v358
      %v465 = vpop.f32.mrb[0].mxu0
      %v466 = vadd.f32 %v381, %v465
      %v467 = vpop.f32.mrb[0].mxu0
      %v468 = vpop.f32.mrb[0].mxu0
      %v469 = vadd.f32 %v381, %v468
      %v470 = vpop.f32.mrb[0].mxu0
      %471 = vmatprep.mubr.bf16.mxu0 0
      %472 = vmatmul.mubr.bf16.gmra.mrb[0].mxu0 %v359
      %v473 = vpop.f32.mrb[0].mxu0
      %v474 = vadd.f32 %v381, %v473
      %v475 = vpop.f32.mrb[0].mxu0
      %v476 = vpop.f32.mrb[0].mxu0
      %v477 = vadd.f32 %v381, %v476
      %v478 = vpop.f32.mrb[0].mxu0
      %479 = vdwg.mxu0
      %vm480 = vcmask 523264
      %481 = vst.msk [vmem:[%s226] sm:$0xff] %vm480, %v466
      %482 = vst.msk [vmem:[%s226 + $0x8] sm:$0xff] %vm480, %v469
      %483 = vst.msk [vmem:[%s226 + $0x10] sm:$0xff] %vm480, %v474
      %484 = vst.msk [vmem:[%s226 + $0x18] sm:$0xff] %vm480, %v477
      %s485 = smul.u32 4, %s16
      %p486 = scmp.lt.s32.totalorder %s485, 7
      %s487 = scalar_select %p486, %s485, 7
      %s488 = smul.addr %s487, 8
      %s489 = scalar_lea.vmem %s5, %s488
      // Predicated region
      $region41: #{_project_images_jit.1} parent=39 // pred_check
        %p490 = pneg %p144
      $region42: #{_project_images_jit.1} parent=39 // pred_check_branch
        %492 = sbr.rel (%p490) target = $region44
      $region43: #{_project_images_jit.1} parent=39 // pred_region
        %s493 = smul.u32 4, %s16
      $region44: #{_project_images_jit.1} parent=39 // pred_fallthru
        _
    $region40: #{_project_images_jit.1} parent=5 // pred_fallthru
      _
    %p494 = scmp.le.s32.totalorder 2, %s11
    // Predicated region
    $region45: #{_project_images_jit.1} parent=5 // pred_check
      %p495 = pneg %p494
    $region46: #{_project_images_jit.1} parent=5 // pred_check_branch
      %497 = sbr.rel (%p495) target = $region48
    $region47: #{_project_images_jit.1} parent=5 // pred_region
      %s498 = ssub.s32 %s11, 2
      // Predicated region
      $region49: #{_project_images_jit.1} parent=47 // pred_check
        %p499 = pneg %p150
      $region50: #{_project_images_jit.1} parent=47 // pred_check_branch
        %501 = sbr.rel (%p499) target = $region52
      $region51: #{_project_images_jit.1} parent=47 // pred_region
        %s502 = smul.u32 4, %s17
        %p503 = scmp.lt.s32.totalorder %s502, 7
        %s504 = scalar_select %p503, %s502, 7
        %s505 = smul.addr %s504, 8
        %s506 = scalar_lea.vmem %s5, %s505
      $region52: #{_project_images_jit.1} parent=47 // pred_fallthru
        _
    $region48: #{_project_images_jit.1} parent=5 // pred_fallthru
      _
  $region6: #{_project_images_jit.1} parent=0 // loop_footer
    %s15 = sadd.s32 1, %s11
  $region7: #{_project_images_jit.1} parent=0 // loop_footer_branch
    %10 = sbr.rel target = $region3
  $region8: #{_project_images_jit.1} parent=0 // loop_exit
    _

</llo_original>
